<compile_context>
chip_gen: v6e
topology: v6e:2x2x1
jax: 0.10.0
libtpu: 0.0.40
codegen_flags: <defaults>
</compile_context>

<pallas_src>
import functools

import jax
import jax.numpy as jnp
from jax import lax
from jax.experimental import pallas as pl
from jax.experimental.pallas import tpu as pltpu


# ---------------------------------------------------------------------------
# Kernel
# ---------------------------------------------------------------------------
def _ssim_kernel(x_ref, y_ref, o_ref, *, win, c1, c2, cov_norm):
    """x_ref, y_ref: (TB, H, W) blocks; o_ref: (TB, H-win+1, W-win+1) block."""
    x = x_ref[...].astype(jnp.float32)
    y = y_ref[...].astype(jnp.float32)
    _, H, W = x.shape
    hout = H - win + 1
    wout = W - win + 1
    inv_np = 1.0 / float(win * win)

    def box_mean(a):
        # Separable win x win windowed mean via XLU rolls, kept at the full
        # aligned (TB, H, W) shape.  Result is valid for h < hout, w < wout;
        # the wrap-around tail is discarded by the final slice.
        s = a
        for d in range(1, win):
            s = s + pltpu.roll(a, shift=W - d, axis=2)   # s[w] = sum_d a[w+d]
        t = s
        for d in range(1, win):
            t = t + pltpu.roll(s, shift=H - d, axis=1)   # t[h] = sum_d s[h+d]
        return t * inv_np

    ux = box_mean(x)
    uy = box_mean(y)
    uxx = box_mean(x * x)
    uyy = box_mean(y * y)
    uxy = box_mean(x * y)

    vx = cov_norm * (uxx - ux * ux)
    vy = cov_norm * (uyy - uy * uy)
    vxy = cov_norm * (uxy - ux * uy)

    a1 = 2.0 * ux * uy + c1
    a2 = 2.0 * vxy + c2
    b1 = ux * ux + uy * uy + c1
    b2 = vx + vy + c2
    s_map = (a1 * a2) / (b1 * b2)

    # Keep only the VALID-conv region.
    o_ref[...] = s_map[:, :hout, :wout].astype(o_ref.dtype)


# ---------------------------------------------------------------------------
# Wrapper
# ---------------------------------------------------------------------------
def _pick_block_batch(n, h, w, itemsize, target_block_bytes=512 * 1024):
    """Largest divisor of n whose (tb, h, w) block stays near the byte target,
    preferring >= 2 grid steps so both v7x TensorCores get work."""
    bytes_per_slab = h * w * max(int(itemsize), 4)  # intermediates are f32
    max_tb = max(1, target_block_bytes // bytes_per_slab)
    divisors = [d for d in range(1, n + 1) if n % d == 0]
    fitting = [d for d in divisors if d <= max_tb] or [1]
    tb = fitting[-1]
    if n // tb < 2:
        multi = [d for d in fitting if n // d >= 2]
        if multi:
            tb = multi[-1]
    return tb


def ssim_pallas(X, Y, data_range=1.0, reduced=True,
                win_size=7, k1=0.01, k2=0.03):
    """SSIM matching the PyTorch module's forward.

    X, Y: (B, C, H, W).  `data_range` must be a Python/NumPy scalar.
    """
    # TODO(synk): tensor-valued (per-batch) data_range is not supported here;
    # it is baked into the kernel as static C1/C2 constants.
    assert X.shape == Y.shape and X.ndim == 4
    B, C, H, W = X.shape
    assert H >= win_size and W >= win_size, "window larger than image"
    hout, wout = H - win_size + 1, W - win_size + 1
    N = B * C

    NP = win_size * win_size
    cov_norm = NP / (NP - 1.0)
    c1 = (k1 * float(data_range)) ** 2
    c2 = (k2 * float(data_range)) ** 2

    # Contiguous reshape only — no strided slicing before the kernel.
    x = X.reshape(N, H, W)
    y = Y.reshape(N, H, W)

    tb = _pick_block_batch(N, H, W, jnp.dtype(X.dtype).itemsize)
    grid = (N // tb,)

    kernel = functools.partial(
        _ssim_kernel, win=win_size, c1=c1, c2=c2, cov_norm=cov_norm)

    s_map = pl.pallas_call(
        kernel,
        out_shape=jax.ShapeDtypeStruct((N, hout, wout), jnp.float32),
        grid_spec=pltpu.PrefetchScalarGridSpec(
            num_scalar_prefetch=0,
            grid=grid,
            in_specs=[
                pl.BlockSpec((tb, H, W), lambda i: (i, 0, 0)),
                pl.BlockSpec((tb, H, W), lambda i: (i, 0, 0)),
            ],
            out_specs=pl.BlockSpec((tb, hout, wout), lambda i: (i, 0, 0)),
        ),
        compiler_params=pltpu.CompilerParams(
            dimension_semantics=("parallel",),
            vmem_limit_bytes=32 << 20,   # safe on v5e/v6e/v7x
        ),
    )(x, y)

    S = s_map.reshape(B, C, hout, wout).astype(X.dtype)
    if reduced:
        return S.mean(axis=(1, 2, 3))
    return S


# ---------------------------------------------------------------------------
# Pure-JAX reference (independent of the kernel's roll-based path)
# ---------------------------------------------------------------------------
def _box_mean_ref(a, win):
    B, C, H, W = a.shape
    out = jnp.zeros((B, C, H - win + 1, W - win + 1), jnp.float32)
    for i in range(win):
        for j in range(win):
            out = out + a[:, :, i:i + H - win + 1, j:j + W - win + 1]
    return out / (win * win)


def ssim_reference(X, Y, win_size=7, k1=0.01, k2=0.03,
                   data_range=1.0, reduced=True):
    NP = win_size * win_size
    cov_norm = NP / (NP - 1.0)
    c1 = (k1 * data_range) ** 2
    c2 = (k2 * data_range) ** 2
    Xf = X.astype(jnp.float32)
    Yf = Y.astype(jnp.float32)
    ux = _box_mean_ref(Xf, win_size)
    uy = _box_mean_ref(Yf, win_size)
    uxx = _box_mean_ref(Xf * Xf, win_size)
    uyy = _box_mean_ref(Yf * Yf, win_size)
    uxy = _box_mean_ref(Xf * Yf, win_size)
    vx = cov_norm * (uxx - ux * ux)
    vy = cov_norm * (uyy - uy * uy)
    vxy = cov_norm * (uxy - ux * uy)
    a1 = 2 * ux * uy + c1
    a2 = 2 * vxy + c2
    b1 = ux * ux + uy * uy + c1
    b2 = vx + vy + c2
    S = (a1 * a2) / (b1 * b2)
    return S.mean(axis=(1, 2, 3)) if reduced else S


# ---------------------------------------------------------------------------
if __name__ == "__main__":
    key = jax.random.PRNGKey(0)
    kx, ky = jax.random.split(key)

    # conv2d with a (1, 1, 7, 7) weight implies C == 1.
    B, C, H, W = 2, 1, 16, 16
    X = jax.random.uniform(kx, (B, C, H, W), dtype=jnp.float32)
    noise = 0.05 * jax.random.normal(ky, (B, C, H, W), dtype=jnp.float32)
    Y = jnp.clip(X + noise, 0.0, 1.0)

    out_reduced = jax.block_until_ready(
        ssim_pallas(X, Y, data_range=1.0, reduced=True))
    out_map = jax.block_until_ready(
        ssim_pallas(X, Y, data_range=1.0, reduced=False))

    ref_reduced = ssim_reference(X, Y, reduced=True)
    ref_map = ssim_reference(X, Y, reduced=False)

    assert out_reduced.shape == (B,)
    assert out_map.shape == (B, C, H - 6, W - 6)
    assert jnp.allclose(out_reduced, ref_reduced, atol=2e-5, rtol=2e-5), \
        "reduced SSIM mismatch vs reference"
    assert jnp.allclose(out_map, ref_map, atol=2e-5, rtol=2e-5), \
        "SSIM map mismatch vs reference"

    print("KERNEL_OK")
</pallas_src>

<mosaic_0001>
module attributes {stable_mosaic.version = 11 : i64} {
  func.func @_ssim_kernel(%arg0: i32, %arg1: memref<1x16x16xf32, #tpu.memory_space<vmem>>, %arg2: memref<1x16x16xf32, #tpu.memory_space<vmem>>, %arg3: memref<1x10x10xf32, #tpu.memory_space<vmem>>) attributes {dimension_semantics = [#tpu.dimension_semantics<parallel>], iteration_bounds = array<i64: 2>, scalar_prefetch = 0 : i64, scratch_operands = 0 : i64, tpu.core_type = #tpu.core_type<tc>, window_params = [{transform_indices = @transform_0, window_bounds = array<i64: 1, 16, 16>}, {transform_indices = @transform_1, window_bounds = array<i64: 1, 16, 16>}, {transform_indices = @transform_2, window_bounds = array<i64: 1, 10, 10>}]} {
    %c0 = arith.constant 0 : index
    %c0_0 = arith.constant 0 : index
    %c0_1 = arith.constant 0 : index
    %0 = vector.load %arg1[%c0, %c0_0, %c0_1] : memref<1x16x16xf32, #tpu.memory_space<vmem>>, vector<1x16x16xf32>
    %c0_2 = arith.constant 0 : index
    %c0_3 = arith.constant 0 : index
    %c0_4 = arith.constant 0 : index
    %1 = vector.load %arg2[%c0_2, %c0_3, %c0_4] : memref<1x16x16xf32, #tpu.memory_space<vmem>>, vector<1x16x16xf32>
    %c15_i32 = arith.constant 15 : i32
    %2 = tpu.dynamic_rotate %0 by %c15_i32 dim 2 : vector<1x16x16xf32>, i32 -> vector<1x16x16xf32>
    %3 = arith.addf %0, %2 : vector<1x16x16xf32>
    %c14_i32 = arith.constant 14 : i32
    %4 = tpu.dynamic_rotate %0 by %c14_i32 dim 2 : vector<1x16x16xf32>, i32 -> vector<1x16x16xf32>
    %5 = arith.addf %3, %4 : vector<1x16x16xf32>
    %c13_i32 = arith.constant 13 : i32
    %6 = tpu.dynamic_rotate %0 by %c13_i32 dim 2 : vector<1x16x16xf32>, i32 -> vector<1x16x16xf32>
    %7 = arith.addf %5, %6 : vector<1x16x16xf32>
    %c12_i32 = arith.constant 12 : i32
    %8 = tpu.dynamic_rotate %0 by %c12_i32 dim 2 : vector<1x16x16xf32>, i32 -> vector<1x16x16xf32>
    %9 = arith.addf %7, %8 : vector<1x16x16xf32>
    %c11_i32 = arith.constant 11 : i32
    %10 = tpu.dynamic_rotate %0 by %c11_i32 dim 2 : vector<1x16x16xf32>, i32 -> vector<1x16x16xf32>
    %11 = arith.addf %9, %10 : vector<1x16x16xf32>
    %c10_i32 = arith.constant 10 : i32
    %12 = tpu.dynamic_rotate %0 by %c10_i32 dim 2 : vector<1x16x16xf32>, i32 -> vector<1x16x16xf32>
    %13 = arith.addf %11, %12 : vector<1x16x16xf32>
    %c15_i32_5 = arith.constant 15 : i32
    %14 = tpu.dynamic_rotate %13 by %c15_i32_5 dim 1 : vector<1x16x16xf32>, i32 -> vector<1x16x16xf32>
    %15 = arith.addf %13, %14 : vector<1x16x16xf32>
    %c14_i32_6 = arith.constant 14 : i32
    %16 = tpu.dynamic_rotate %13 by %c14_i32_6 dim 1 : vector<1x16x16xf32>, i32 -> vector<1x16x16xf32>
    %17 = arith.addf %15, %16 : vector<1x16x16xf32>
    %c13_i32_7 = arith.constant 13 : i32
    %18 = tpu.dynamic_rotate %13 by %c13_i32_7 dim 1 : vector<1x16x16xf32>, i32 -> vector<1x16x16xf32>
    %19 = arith.addf %17, %18 : vector<1x16x16xf32>
    %c12_i32_8 = arith.constant 12 : i32
    %20 = tpu.dynamic_rotate %13 by %c12_i32_8 dim 1 : vector<1x16x16xf32>, i32 -> vector<1x16x16xf32>
    %21 = arith.addf %19, %20 : vector<1x16x16xf32>
    %c11_i32_9 = arith.constant 11 : i32
    %22 = tpu.dynamic_rotate %13 by %c11_i32_9 dim 1 : vector<1x16x16xf32>, i32 -> vector<1x16x16xf32>
    %23 = arith.addf %21, %22 : vector<1x16x16xf32>
    %c10_i32_10 = arith.constant 10 : i32
    %24 = tpu.dynamic_rotate %13 by %c10_i32_10 dim 1 : vector<1x16x16xf32>, i32 -> vector<1x16x16xf32>
    %25 = arith.addf %23, %24 : vector<1x16x16xf32>
    %cst = arith.constant 0.0204081628 : f32
    %26 = vector.broadcast %cst : f32 to vector<1x16x16xf32>
    %27 = arith.mulf %25, %26 : vector<1x16x16xf32>
    %c15_i32_11 = arith.constant 15 : i32
    %28 = tpu.dynamic_rotate %1 by %c15_i32_11 dim 2 : vector<1x16x16xf32>, i32 -> vector<1x16x16xf32>
    %29 = arith.addf %1, %28 : vector<1x16x16xf32>
    %c14_i32_12 = arith.constant 14 : i32
    %30 = tpu.dynamic_rotate %1 by %c14_i32_12 dim 2 : vector<1x16x16xf32>, i32 -> vector<1x16x16xf32>
    %31 = arith.addf %29, %30 : vector<1x16x16xf32>
    %c13_i32_13 = arith.constant 13 : i32
    %32 = tpu.dynamic_rotate %1 by %c13_i32_13 dim 2 : vector<1x16x16xf32>, i32 -> vector<1x16x16xf32>
    %33 = arith.addf %31, %32 : vector<1x16x16xf32>
    %c12_i32_14 = arith.constant 12 : i32
    %34 = tpu.dynamic_rotate %1 by %c12_i32_14 dim 2 : vector<1x16x16xf32>, i32 -> vector<1x16x16xf32>
    %35 = arith.addf %33, %34 : vector<1x16x16xf32>
    %c11_i32_15 = arith.constant 11 : i32
    %36 = tpu.dynamic_rotate %1 by %c11_i32_15 dim 2 : vector<1x16x16xf32>, i32 -> vector<1x16x16xf32>
    %37 = arith.addf %35, %36 : vector<1x16x16xf32>
    %c10_i32_16 = arith.constant 10 : i32
    %38 = tpu.dynamic_rotate %1 by %c10_i32_16 dim 2 : vector<1x16x16xf32>, i32 -> vector<1x16x16xf32>
    %39 = arith.addf %37, %38 : vector<1x16x16xf32>
    %c15_i32_17 = arith.constant 15 : i32
    %40 = tpu.dynamic_rotate %39 by %c15_i32_17 dim 1 : vector<1x16x16xf32>, i32 -> vector<1x16x16xf32>
    %41 = arith.addf %39, %40 : vector<1x16x16xf32>
    %c14_i32_18 = arith.constant 14 : i32
    %42 = tpu.dynamic_rotate %39 by %c14_i32_18 dim 1 : vector<1x16x16xf32>, i32 -> vector<1x16x16xf32>
    %43 = arith.addf %41, %42 : vector<1x16x16xf32>
    %c13_i32_19 = arith.constant 13 : i32
    %44 = tpu.dynamic_rotate %39 by %c13_i32_19 dim 1 : vector<1x16x16xf32>, i32 -> vector<1x16x16xf32>
    %45 = arith.addf %43, %44 : vector<1x16x16xf32>
    %c12_i32_20 = arith.constant 12 : i32
    %46 = tpu.dynamic_rotate %39 by %c12_i32_20 dim 1 : vector<1x16x16xf32>, i32 -> vector<1x16x16xf32>
    %47 = arith.addf %45, %46 : vector<1x16x16xf32>
    %c11_i32_21 = arith.constant 11 : i32
    %48 = tpu.dynamic_rotate %39 by %c11_i32_21 dim 1 : vector<1x16x16xf32>, i32 -> vector<1x16x16xf32>
    %49 = arith.addf %47, %48 : vector<1x16x16xf32>
    %c10_i32_22 = arith.constant 10 : i32
    %50 = tpu.dynamic_rotate %39 by %c10_i32_22 dim 1 : vector<1x16x16xf32>, i32 -> vector<1x16x16xf32>
    %51 = arith.addf %49, %50 : vector<1x16x16xf32>
    %cst_23 = arith.constant 0.0204081628 : f32
    %52 = vector.broadcast %cst_23 : f32 to vector<1x16x16xf32>
    %53 = arith.mulf %51, %52 : vector<1x16x16xf32>
    %54 = arith.mulf %0, %0 : vector<1x16x16xf32>
    %c15_i32_24 = arith.constant 15 : i32
    %55 = tpu.dynamic_rotate %54 by %c15_i32_24 dim 2 : vector<1x16x16xf32>, i32 -> vector<1x16x16xf32>
    %56 = arith.addf %54, %55 : vector<1x16x16xf32>
    %c14_i32_25 = arith.constant 14 : i32
    %57 = tpu.dynamic_rotate %54 by %c14_i32_25 dim 2 : vector<1x16x16xf32>, i32 -> vector<1x16x16xf32>
    %58 = arith.addf %56, %57 : vector<1x16x16xf32>
    %c13_i32_26 = arith.constant 13 : i32
    %59 = tpu.dynamic_rotate %54 by %c13_i32_26 dim 2 : vector<1x16x16xf32>, i32 -> vector<1x16x16xf32>
    %60 = arith.addf %58, %59 : vector<1x16x16xf32>
    %c12_i32_27 = arith.constant 12 : i32
    %61 = tpu.dynamic_rotate %54 by %c12_i32_27 dim 2 : vector<1x16x16xf32>, i32 -> vector<1x16x16xf32>
    %62 = arith.addf %60, %61 : vector<1x16x16xf32>
    %c11_i32_28 = arith.constant 11 : i32
    %63 = tpu.dynamic_rotate %54 by %c11_i32_28 dim 2 : vector<1x16x16xf32>, i32 -> vector<1x16x16xf32>
    %64 = arith.addf %62, %63 : vector<1x16x16xf32>
    %c10_i32_29 = arith.constant 10 : i32
    %65 = tpu.dynamic_rotate %54 by %c10_i32_29 dim 2 : vector<1x16x16xf32>, i32 -> vector<1x16x16xf32>
    %66 = arith.addf %64, %65 : vector<1x16x16xf32>
    %c15_i32_30 = arith.constant 15 : i32
    %67 = tpu.dynamic_rotate %66 by %c15_i32_30 dim 1 : vector<1x16x16xf32>, i32 -> vector<1x16x16xf32>
    %68 = arith.addf %66, %67 : vector<1x16x16xf32>
    %c14_i32_31 = arith.constant 14 : i32
    %69 = tpu.dynamic_rotate %66 by %c14_i32_31 dim 1 : vector<1x16x16xf32>, i32 -> vector<1x16x16xf32>
    %70 = arith.addf %68, %69 : vector<1x16x16xf32>
    %c13_i32_32 = arith.constant 13 : i32
    %71 = tpu.dynamic_rotate %66 by %c13_i32_32 dim 1 : vector<1x16x16xf32>, i32 -> vector<1x16x16xf32>
    %72 = arith.addf %70, %71 : vector<1x16x16xf32>
    %c12_i32_33 = arith.constant 12 : i32
    %73 = tpu.dynamic_rotate %66 by %c12_i32_33 dim 1 : vector<1x16x16xf32>, i32 -> vector<1x16x16xf32>
    %74 = arith.addf %72, %73 : vector<1x16x16xf32>
    %c11_i32_34 = arith.constant 11 : i32
    %75 = tpu.dynamic_rotate %66 by %c11_i32_34 dim 1 : vector<1x16x16xf32>, i32 -> vector<1x16x16xf32>
    %76 = arith.addf %74, %75 : vector<1x16x16xf32>
    %c10_i32_35 = arith.constant 10 : i32
    %77 = tpu.dynamic_rotate %66 by %c10_i32_35 dim 1 : vector<1x16x16xf32>, i32 -> vector<1x16x16xf32>
    %78 = arith.addf %76, %77 : vector<1x16x16xf32>
    %cst_36 = arith.constant 0.0204081628 : f32
    %79 = vector.broadcast %cst_36 : f32 to vector<1x16x16xf32>
    %80 = arith.mulf %78, %79 : vector<1x16x16xf32>
    %81 = arith.mulf %1, %1 : vector<1x16x16xf32>
    %c15_i32_37 = arith.constant 15 : i32
    %82 = tpu.dynamic_rotate %81 by %c15_i32_37 dim 2 : vector<1x16x16xf32>, i32 -> vector<1x16x16xf32>
    %83 = arith.addf %81, %82 : vector<1x16x16xf32>
    %c14_i32_38 = arith.constant 14 : i32
    %84 = tpu.dynamic_rotate %81 by %c14_i32_38 dim 2 : vector<1x16x16xf32>, i32 -> vector<1x16x16xf32>
    %85 = arith.addf %83, %84 : vector<1x16x16xf32>
    %c13_i32_39 = arith.constant 13 : i32
    %86 = tpu.dynamic_rotate %81 by %c13_i32_39 dim 2 : vector<1x16x16xf32>, i32 -> vector<1x16x16xf32>
    %87 = arith.addf %85, %86 : vector<1x16x16xf32>
    %c12_i32_40 = arith.constant 12 : i32
    %88 = tpu.dynamic_rotate %81 by %c12_i32_40 dim 2 : vector<1x16x16xf32>, i32 -> vector<1x16x16xf32>
    %89 = arith.addf %87, %88 : vector<1x16x16xf32>
    %c11_i32_41 = arith.constant 11 : i32
    %90 = tpu.dynamic_rotate %81 by %c11_i32_41 dim 2 : vector<1x16x16xf32>, i32 -> vector<1x16x16xf32>
    %91 = arith.addf %89, %90 : vector<1x16x16xf32>
    %c10_i32_42 = arith.constant 10 : i32
    %92 = tpu.dynamic_rotate %81 by %c10_i32_42 dim 2 : vector<1x16x16xf32>, i32 -> vector<1x16x16xf32>
    %93 = arith.addf %91, %92 : vector<1x16x16xf32>
    %c15_i32_43 = arith.constant 15 : i32
    %94 = tpu.dynamic_rotate %93 by %c15_i32_43 dim 1 : vector<1x16x16xf32>, i32 -> vector<1x16x16xf32>
    %95 = arith.addf %93, %94 : vector<1x16x16xf32>
    %c14_i32_44 = arith.constant 14 : i32
    %96 = tpu.dynamic_rotate %93 by %c14_i32_44 dim 1 : vector<1x16x16xf32>, i32 -> vector<1x16x16xf32>
    %97 = arith.addf %95, %96 : vector<1x16x16xf32>
    %c13_i32_45 = arith.constant 13 : i32
    %98 = tpu.dynamic_rotate %93 by %c13_i32_45 dim 1 : vector<1x16x16xf32>, i32 -> vector<1x16x16xf32>
    %99 = arith.addf %97, %98 : vector<1x16x16xf32>
    %c12_i32_46 = arith.constant 12 : i32
    %100 = tpu.dynamic_rotate %93 by %c12_i32_46 dim 1 : vector<1x16x16xf32>, i32 -> vector<1x16x16xf32>
    %101 = arith.addf %99, %100 : vector<1x16x16xf32>
    %c11_i32_47 = arith.constant 11 : i32
    %102 = tpu.dynamic_rotate %93 by %c11_i32_47 dim 1 : vector<1x16x16xf32>, i32 -> vector<1x16x16xf32>
    %103 = arith.addf %101, %102 : vector<1x16x16xf32>
    %c10_i32_48 = arith.constant 10 : i32
    %104 = tpu.dynamic_rotate %93 by %c10_i32_48 dim 1 : vector<1x16x16xf32>, i32 -> vector<1x16x16xf32>
    %105 = arith.addf %103, %104 : vector<1x16x16xf32>
    %cst_49 = arith.constant 0.0204081628 : f32
    %106 = vector.broadcast %cst_49 : f32 to vector<1x16x16xf32>
    %107 = arith.mulf %105, %106 : vector<1x16x16xf32>
    %108 = arith.mulf %0, %1 : vector<1x16x16xf32>
    %c15_i32_50 = arith.constant 15 : i32
    %109 = tpu.dynamic_rotate %108 by %c15_i32_50 dim 2 : vector<1x16x16xf32>, i32 -> vector<1x16x16xf32>
    %110 = arith.addf %108, %109 : vector<1x16x16xf32>
    %c14_i32_51 = arith.constant 14 : i32
    %111 = tpu.dynamic_rotate %108 by %c14_i32_51 dim 2 : vector<1x16x16xf32>, i32 -> vector<1x16x16xf32>
    %112 = arith.addf %110, %111 : vector<1x16x16xf32>
    %c13_i32_52 = arith.constant 13 : i32
    %113 = tpu.dynamic_rotate %108 by %c13_i32_52 dim 2 : vector<1x16x16xf32>, i32 -> vector<1x16x16xf32>
    %114 = arith.addf %112, %113 : vector<1x16x16xf32>
    %c12_i32_53 = arith.constant 12 : i32
    %115 = tpu.dynamic_rotate %108 by %c12_i32_53 dim 2 : vector<1x16x16xf32>, i32 -> vector<1x16x16xf32>
    %116 = arith.addf %114, %115 : vector<1x16x16xf32>
    %c11_i32_54 = arith.constant 11 : i32
    %117 = tpu.dynamic_rotate %108 by %c11_i32_54 dim 2 : vector<1x16x16xf32>, i32 -> vector<1x16x16xf32>
    %118 = arith.addf %116, %117 : vector<1x16x16xf32>
    %c10_i32_55 = arith.constant 10 : i32
    %119 = tpu.dynamic_rotate %108 by %c10_i32_55 dim 2 : vector<1x16x16xf32>, i32 -> vector<1x16x16xf32>
    %120 = arith.addf %118, %119 : vector<1x16x16xf32>
    %c15_i32_56 = arith.constant 15 : i32
    %121 = tpu.dynamic_rotate %120 by %c15_i32_56 dim 1 : vector<1x16x16xf32>, i32 -> vector<1x16x16xf32>
    %122 = arith.addf %120, %121 : vector<1x16x16xf32>
    %c14_i32_57 = arith.constant 14 : i32
    %123 = tpu.dynamic_rotate %120 by %c14_i32_57 dim 1 : vector<1x16x16xf32>, i32 -> vector<1x16x16xf32>
    %124 = arith.addf %122, %123 : vector<1x16x16xf32>
    %c13_i32_58 = arith.constant 13 : i32
    %125 = tpu.dynamic_rotate %120 by %c13_i32_58 dim 1 : vector<1x16x16xf32>, i32 -> vector<1x16x16xf32>
    %126 = arith.addf %124, %125 : vector<1x16x16xf32>
    %c12_i32_59 = arith.constant 12 : i32
    %127 = tpu.dynamic_rotate %120 by %c12_i32_59 dim 1 : vector<1x16x16xf32>, i32 -> vector<1x16x16xf32>
    %128 = arith.addf %126, %127 : vector<1x16x16xf32>
    %c11_i32_60 = arith.constant 11 : i32
    %129 = tpu.dynamic_rotate %120 by %c11_i32_60 dim 1 : vector<1x16x16xf32>, i32 -> vector<1x16x16xf32>
    %130 = arith.addf %128, %129 : vector<1x16x16xf32>
    %c10_i32_61 = arith.constant 10 : i32
    %131 = tpu.dynamic_rotate %120 by %c10_i32_61 dim 1 : vector<1x16x16xf32>, i32 -> vector<1x16x16xf32>
    %132 = arith.addf %130, %131 : vector<1x16x16xf32>
    %cst_62 = arith.constant 0.0204081628 : f32
    %133 = vector.broadcast %cst_62 : f32 to vector<1x16x16xf32>
    %134 = arith.mulf %132, %133 : vector<1x16x16xf32>
    %135 = arith.mulf %27, %27 : vector<1x16x16xf32>
    %136 = arith.subf %80, %135 : vector<1x16x16xf32>
    %cst_63 = arith.constant 1.02083337 : f32
    %137 = vector.broadcast %cst_63 : f32 to vector<1x16x16xf32>
    %138 = arith.mulf %137, %136 : vector<1x16x16xf32>
    %139 = arith.mulf %53, %53 : vector<1x16x16xf32>
    %140 = arith.subf %107, %139 : vector<1x16x16xf32>
    %cst_64 = arith.constant 1.02083337 : f32
    %141 = vector.broadcast %cst_64 : f32 to vector<1x16x16xf32>
    %142 = arith.mulf %141, %140 : vector<1x16x16xf32>
    %143 = arith.mulf %27, %53 : vector<1x16x16xf32>
    %144 = arith.subf %134, %143 : vector<1x16x16xf32>
    %cst_65 = arith.constant 1.02083337 : f32
    %145 = vector.broadcast %cst_65 : f32 to vector<1x16x16xf32>
    %146 = arith.mulf %145, %144 : vector<1x16x16xf32>
    %cst_66 = arith.constant 2.000000e+00 : f32
    %147 = vector.broadcast %cst_66 : f32 to vector<1x16x16xf32>
    %148 = arith.mulf %147, %27 : vector<1x16x16xf32>
    %149 = arith.mulf %148, %53 : vector<1x16x16xf32>
    %cst_67 = arith.constant 9.99999974E-5 : f32
    %150 = vector.broadcast %cst_67 : f32 to vector<1x16x16xf32>
    %151 = arith.addf %149, %150 : vector<1x16x16xf32>
    %cst_68 = arith.constant 2.000000e+00 : f32
    %152 = vector.broadcast %cst_68 : f32 to vector<1x16x16xf32>
    %153 = arith.mulf %152, %146 : vector<1x16x16xf32>
    %cst_69 = arith.constant 8.99999984E-4 : f32
    %154 = vector.broadcast %cst_69 : f32 to vector<1x16x16xf32>
    %155 = arith.addf %153, %154 : vector<1x16x16xf32>
    %156 = arith.mulf %27, %27 : vector<1x16x16xf32>
    %157 = arith.mulf %53, %53 : vector<1x16x16xf32>
    %158 = arith.addf %156, %157 : vector<1x16x16xf32>
    %cst_70 = arith.constant 9.99999974E-5 : f32
    %159 = vector.broadcast %cst_70 : f32 to vector<1x16x16xf32>
    %160 = arith.addf %158, %159 : vector<1x16x16xf32>
    %161 = arith.addf %138, %142 : vector<1x16x16xf32>
    %cst_71 = arith.constant 8.99999984E-4 : f32
    %162 = vector.broadcast %cst_71 : f32 to vector<1x16x16xf32>
    %163 = arith.addf %161, %162 : vector<1x16x16xf32>
    %164 = arith.mulf %151, %155 : vector<1x16x16xf32>
    %165 = arith.mulf %160, %163 : vector<1x16x16xf32>
    %166 = arith.divf %164, %165 : vector<1x16x16xf32>
    %167 = vector.extract_strided_slice %166 {offsets = [0, 0, 0], sizes = [1, 10, 10], strides = [1, 1, 1]} : vector<1x16x16xf32> to vector<1x10x10xf32>
    %c0_72 = arith.constant 0 : index
    %c0_73 = arith.constant 0 : index
    %c0_74 = arith.constant 0 : index
    %168 = vector.load %arg3[%c0_72, %c0_73, %c0_74] : memref<1x10x10xf32, #tpu.memory_space<vmem>>, vector<1x10x10xf32>
    tpu.vector_store %arg3[%c0_72, %c0_73, %c0_74], %167 {strides = array<i32>} : memref<1x10x10xf32, #tpu.memory_space<vmem>>, vector<1x10x10xf32>,
    return
  }
  func.func @transform_0(%arg0: i32) -> (i32, i32, i32) {
    %c0_i32 = arith.constant 0 : i32
    %c0_i32_0 = arith.constant 0 : i32
    %c0_i32_1 = arith.constant 0 : i32
    return %arg0, %c0_i32, %c0_i32_0 : i32, i32, i32
  }
  func.func @transform_1(%arg0: i32) -> (i32, i32, i32) {
    %c0_i32 = arith.constant 0 : i32
    %c0_i32_0 = arith.constant 0 : i32
    %c0_i32_1 = arith.constant 0 : i32
    return %arg0, %c0_i32, %c0_i32_0 : i32, i32, i32
  }
  func.func @transform_2(%arg0: i32) -> (i32, i32, i32) {
    %c0_i32 = arith.constant 0 : i32
    %c0_i32_0 = arith.constant 0 : i32
    %c0_i32_1 = arith.constant 0 : i32
    return %arg0, %c0_i32, %c0_i32_0 : i32, i32, i32
  }
}

</mosaic_0001>

<llo_original>
// kernel: tpu_custom_call.1
$region0: #{tpu_custom_call.1}
  #allocation0 [shape = 'u32[]', space=smem, size = 0x4, offset = 0x4, fixed_abs, tag = 'smem constant byte address 0x4 - core index']
  #allocation1 [shape = 'u32[144,128]{1,0:T(1,128)}', space=vmem, size = 0x12000, scoped, tag = 'internal scratch']
  %s0 = inlined_call_operand.hbm [shape: f32[2,16,16], index: 0, kind: input, shape index: {}]
  %s1 = inlined_call_operand.hbm [shape: f32[2,16,16], index: 1, kind: input, shape index: {}]
  %s2 = inlined_call_operand.vmem [shape: f32[2,10,10], index: 2, kind: output, shape index: {}]
  %s3 = sld [smem:[#allocation0]]
  $region49: #{tpu_custom_call.1} parent=0
    _
  %s5 = ssub.s32 1, %s3
  %s6 = scalar_select 0, %s5, %s3
  $region1: #{tpu_custom_call.1} parent=0
    #allocation2 [shape = 'u8[16384]{0}', space=vmem, size = 0x4000, scoped, tag = 'input window, operand 0']
    #allocation3 [shape = 's32[2]{0}', space=sflag, size = 0x8, scoped, tag = 'scoped memory for tpu_custom_call.1']
    #allocation4 [shape = 'u8[16384]{0}', space=vmem, size = 0x4000, scoped, tag = 'input window, operand 1']
    #allocation5 [shape = 's32[2]{0}', space=sflag, size = 0x8, scoped, tag = 'scoped memory for tpu_custom_call.1']
    %7 = vsyncpa [#allocation3], 0
    %s8 = scalar_lea.sflag [#allocation3], 1
    %9 = vsyncpa %s8, 0
    %10 = vsyncpa [#allocation5], 0
    %s11 = scalar_lea.sflag [#allocation5], 1
    %12 = vsyncpa %s11, 0
    loop: start=0, step=1, limit=4
    $region2: #{tpu_custom_call.1} parent=1 // loop_pre_header
      _
    $region3: #{tpu_custom_call.1} parent=1 // loop_header
      %s14 = sphi 0, %s18
      %p15 = scmp.ge.s32.totalorder %s14, 4
      %s24 = sphi 0, %s26
      %s27 = sphi 0, %s24
      %s28 = sphi 0, %s27
      %s44 = sphi 0, %s28
      %s50 = sphi 0, %s52
      %s53 = sphi 0, %s50
      %s54 = sphi 0, %s53
      %s70 = sphi 0, %s54
      %s76 = sphi 0, %s78
      %s79 = sphi 0, %s76
      %s80 = sphi 0, %s79
      %s96 = sphi 0, %s80
    $region4: #{tpu_custom_call.1} parent=1 // loop_header_branch
      %17 = sbr.rel (%p15) target = $region8
    $region5: #{tpu_custom_call.1} parent=1 // loop_body
      %s19 = ssub.s32 %s14, 1
      %s20 = ssub.s32 %s14, 2
      %s21 = sadd.s32 %s14, 1
      %s22 = ssub.s32 %s14, %s21
      %p23 = scmp.eq.s32.totalorder %s22, 0
      %s25 = sadd.s32 %s24, 1
      %s26 = scalar_select %p23, %s24, %s25
      %p29 = pneg %p23
      %p30 = scmp.eq.s32.totalorder %s14, 1
      %p31 = por %p29, %p30
      %p32 = scmp.ne.s32.totalorder %s24, %s27
      %p33 = scmp.eq.s32.totalorder %s14, 0
      %p34 = por %p32, %p33
      %p35 = scmp.ne.s32.totalorder %s24, %s27
      %p36 = scmp.eq.s32.totalorder %s19, 1
      %p37 = por %p35, %p36
      %p38 = scmp.ne.s32.totalorder %s27, %s28
      %p39 = scmp.eq.s32.totalorder %s19, 0
      %p40 = por %p38, %p39
      %p41 = scmp.ne.s32.totalorder %s27, %s28
      %p42 = scmp.eq.s32.totalorder %s20, 1
      %p43 = por %p41, %p42
      %p45 = scmp.ne.s32.totalorder %s28, %s44
      %p46 = scmp.eq.s32.totalorder %s20, 0
      %p47 = por %p45, %p46
      %s48 = ssub.s32 %s14, %s21
      %p49 = scmp.eq.s32.totalorder %s48, 0
      %s51 = sadd.s32 %s50, 1
      %s52 = scalar_select %p49, %s50, %s51
      %p55 = pneg %p49
      %p56 = scmp.eq.s32.totalorder %s14, 1
      %p57 = por %p55, %p56
      %p58 = scmp.ne.s32.totalorder %s50, %s53
      %p59 = scmp.eq.s32.totalorder %s14, 0
      %p60 = por %p58, %p59
      %p61 = scmp.ne.s32.totalorder %s50, %s53
      %p62 = scmp.eq.s32.totalorder %s19, 1
      %p63 = por %p61, %p62
      %p64 = scmp.ne.s32.totalorder %s53, %s54
      %p65 = scmp.eq.s32.totalorder %s19, 0
      %p66 = por %p64, %p65
      %p67 = scmp.ne.s32.totalorder %s53, %s54
      %p68 = scmp.eq.s32.totalorder %s20, 1
      %p69 = por %p67, %p68
      %p71 = scmp.ne.s32.totalorder %s54, %s70
      %p72 = scmp.eq.s32.totalorder %s20, 0
      %p73 = por %p71, %p72
      %s74 = ssub.s32 %s14, %s21
      %p75 = scmp.eq.s32.totalorder %s74, 0
      %s77 = sadd.s32 %s76, 1
      %s78 = scalar_select %p75, %s76, %s77
      %p81 = pneg %p75
      %p82 = scmp.eq.s32.totalorder %s14, 1
      %p83 = por %p81, %p82
      %p84 = scmp.ne.s32.totalorder %s76, %s79
      %p85 = scmp.eq.s32.totalorder %s14, 0
      %p86 = por %p84, %p85
      %p87 = scmp.ne.s32.totalorder %s76, %s79
      %p88 = scmp.eq.s32.totalorder %s19, 1
      %p89 = por %p87, %p88
      %p90 = scmp.ne.s32.totalorder %s79, %s80
      %p91 = scmp.eq.s32.totalorder %s19, 0
      %p92 = por %p90, %p91
      %p93 = scmp.ne.s32.totalorder %s79, %s80
      %p94 = scmp.eq.s32.totalorder %s20, 1
      %p95 = por %p93, %p94
      %p97 = scmp.ne.s32.totalorder %s80, %s96
      %p98 = scmp.eq.s32.totalorder %s20, 0
      %p99 = por %p97, %p98
      %p100 = scmp.le.s32.totalorder 1, %s14
      %p101 = scmp.lt.s32.totalorder %s14, 3
      %p102 = pnand %p100, %p101
      %p103 = pneg %p102
      // Predicated region
      $region9: #{tpu_custom_call.1} parent=5 // pred_check
        _
      $region10: #{tpu_custom_call.1} parent=5 // pred_check_branch
        %105 = sbr.rel (%p102) target = $region12
      $region11: #{tpu_custom_call.1} parent=5 // pred_region
        %s106 = ssub.s32 %s14, 1
      $region12: #{tpu_custom_call.1} parent=5 // pred_fallthru
        _
      %p107 = scmp.lt.s32.totalorder %s14, 2
      // Predicated region
      $region13: #{tpu_custom_call.1} parent=5 // pred_check
        %p108 = pneg %p107
      $region14: #{tpu_custom_call.1} parent=5 // pred_check_branch
        %110 = sbr.rel (%p108) target = $region16
      $region15: #{tpu_custom_call.1} parent=5 // pred_region
        // Predicated region
        $region17: #{tpu_custom_call.1} parent=15 // pred_check
          %p111 = pneg %p34
        $region18: #{tpu_custom_call.1} parent=15 // pred_check_branch
          %113 = sbr.rel (%p111) target = $region20
        $region19: #{tpu_custom_call.1} parent=15 // pred_region
          %s114 = sand.u32 %s24, 1
          %s115 = scalar_lea.sflag [#allocation3], %s114
          %s116 = sand.u32 %s24, 1
          %s117 = smul.addr %s116, 16
          %s118 = scalar_lea.vmem [#allocation2], %s117
          %s120 = ssub.s32 256, 256
          %121 = vsyncadd %s115, %s120
          %s122 = smul.addr %s14, 2
          %s123 = smul.addr %s122, 128
          %s124 = scalar_lea.hbm %s0, %s123
          %s125 = sshll.u32 %s118, 4
          %s126 = int_to_ptr.vmem [resolvable:$true] %s125
          %131 = dma.hbm_to_vmem [thread:$0]  %s124, 256, %s126, %s115, 128, 128, 8
        $region20: #{tpu_custom_call.1} parent=15 // pred_fallthru
          _
        // Predicated region
        $region21: #{tpu_custom_call.1} parent=15 // pred_check
          %p132 = pneg %p60
        $region22: #{tpu_custom_call.1} parent=15 // pred_check_branch
          %134 = sbr.rel (%p132) target = $region24
        $region23: #{tpu_custom_call.1} parent=15 // pred_region
          %s135 = sand.u32 %s50, 1
          %s136 = scalar_lea.sflag [#allocation5], %s135
          %s137 = sand.u32 %s50, 1
          %s138 = smul.addr %s137, 16
          %s139 = scalar_lea.vmem [#allocation4], %s138
          %s141 = ssub.s32 256, 256
          %142 = vsyncadd %s136, %s141
          %s143 = smul.addr %s14, 2
          %s144 = smul.addr %s143, 128
          %s145 = scalar_lea.hbm %s1, %s144
          %s146 = sshll.u32 %s139, 4
          %s147 = int_to_ptr.vmem [resolvable:$true] %s146
          %152 = dma.hbm_to_vmem [thread:$0]  %s145, 256, %s147, %s136, 128, 128, 8
        $region24: #{tpu_custom_call.1} parent=15 // pred_fallthru
          _
      $region16: #{tpu_custom_call.1} parent=5 // pred_fallthru
        _
      %p153 = scmp.le.s32.totalorder 1, %s14
      %p154 = scmp.lt.s32.totalorder %s14, 3
      %p155 = pnand %p153, %p154
      %p156 = pneg %p155
      // Predicated region
      $region25: #{tpu_custom_call.1} parent=5 // pred_check
        _
      $region26: #{tpu_custom_call.1} parent=5 // pred_check_branch
        %158 = sbr.rel (%p155) target = $region28
      $region27: #{tpu_custom_call.1} parent=5 // pred_region
        %s159 = ssub.s32 %s14, 1
        %s160 = sand.u32 %s27, 1
        %s161 = scalar_lea.sflag [#allocation3], %s160
        %s162 = sand.u32 %s27, 1
        %s163 = smul.addr %s162, 16
        %s164 = scalar_lea.vmem [#allocation2], %s163
        // Predicated region
        $region29: #{tpu_custom_call.1} parent=27 // pred_check
          %p165 = pneg %p40
        $region30: #{tpu_custom_call.1} parent=27 // pred_check_branch
          %167 = sbr.rel (%p165) target = $region32
        $region31: #{tpu_custom_call.1} parent=27 // pred_region
          %168 = dma.done %s161, 256
        $region32: #{tpu_custom_call.1} parent=27 // pred_fallthru
          _
        %s169 = sand.u32 %s53, 1
        %s170 = scalar_lea.sflag [#allocation5], %s169
        %s171 = sand.u32 %s53, 1
        %s172 = smul.addr %s171, 16
        %s173 = scalar_lea.vmem [#allocation4], %s172
        // Predicated region
        $region33: #{tpu_custom_call.1} parent=27 // pred_check
          %p174 = pneg %p66
        $region34: #{tpu_custom_call.1} parent=27 // pred_check_branch
          %176 = sbr.rel (%p174) target = $region36
        $region35: #{tpu_custom_call.1} parent=27 // pred_region
          %177 = dma.done %s170, 256
        $region36: #{tpu_custom_call.1} parent=27 // pred_fallthru
          _
        %s178 = sand.u32 %s27, 1
        %s179 = scalar_lea.sflag [#allocation3], %s178
        %s180 = sand.u32 %s27, 1
        %s181 = smul.addr %s180, 16
        %s182 = scalar_lea.vmem [#allocation2], %s181
        %p183 = pneg %p40
        %p184 = pneg %p37
        %s185 = sand.u32 %s53, 1
        %s186 = scalar_lea.sflag [#allocation5], %s185
        %s187 = sand.u32 %s53, 1
        %s188 = smul.addr %s187, 16
        %s189 = scalar_lea.vmem [#allocation4], %s188
        %p190 = pneg %p66
        %p191 = pneg %p63
        %p192 = pneg %p92
        %p193 = pneg %p89
        %p194 = scmp.lt.s32.totalorder %s19, 1
        %s195 = scalar_select %p194, %s19, 1
        %s196 = smul.addr %s195, 2
        %s197 = smul.addr %s196, 8
        %s198 = scalar_lea.vmem %s2, %s197
        %p199 = scmp.lt.s32.totalorder %s19, 1
        %s200 = scalar_select %p199, %s19, 1
        %s201 = smul.addr %s200, 2
        %s202 = smul.addr %s201, 8
        %s203 = scalar_lea.vmem %s2, %s202
        %v204 = vld [vmem:[%s164] sm:$0xff]
        %v205 = vld [vmem:[%s164 + $0x8] sm:$0xff]
        %v206 = vld [vmem:[%s173] sm:$0xff]
        %v207 = vld [vmem:[%s173 + $0x8] sm:$0xff]
        %vm208 = vcmask 1047680
        %209 = vrot.lane.b32.xlu0 %v204, 16
        %v210 = vpop.permute.xlu0 %209
        %v211 = vsel %vm208, %v210, %v204
        %212 = vrot.lane.b32.xlu0 %v205, 16
        %v213 = vpop.permute.xlu0 %212
        %v214 = vsel %vm208, %v213, %v205
        %215 = vrot.lane.b32.xlu0 %v211, 16
        %v216 = vpop.permute.xlu0 %215
        %217 = vrot.lane.b32.xlu0 %v214, 16
        %v218 = vpop.permute.xlu0 %217
        %v219 = vsel %vm208, %v216, %v204
        %v220 = vsel %vm208, %v218, %v205
        %223 = vrot.lane.b32.xlu0 %v219, 127
        %v224 = vpop.permute.xlu0 %223
        %225 = vrot.lane.b32.xlu0 %v220, 127
        %v226 = vpop.permute.xlu0 %225
        %v229 = vadd.f32 %v204, %v224
        %v230 = vadd.f32 %v205, %v226
        %231 = vrot.lane.b32.xlu0 %v219, 126
        %v232 = vpop.permute.xlu0 %231
        %233 = vrot.lane.b32.xlu0 %v220, 126
        %v234 = vpop.permute.xlu0 %233
        %v237 = vadd.f32 %v229, %v232
        %v238 = vadd.f32 %v230, %v234
        %239 = vrot.lane.b32.xlu0 %v219, 125
        %v240 = vpop.permute.xlu0 %239
        %241 = vrot.lane.b32.xlu0 %v220, 125
        %v242 = vpop.permute.xlu0 %241
        %v245 = vadd.f32 %v237, %v240
        %v246 = vadd.f32 %v238, %v242
        %247 = vrot.lane.b32.xlu0 %v219, 124
        %v248 = vpop.permute.xlu0 %247
        %249 = vrot.lane.b32.xlu0 %v220, 124
        %v250 = vpop.permute.xlu0 %249
        %v253 = vadd.f32 %v245, %v248
        %v254 = vadd.f32 %v246, %v250
        %255 = vrot.lane.b32.xlu0 %v219, 123
        %v256 = vpop.permute.xlu0 %255
        %257 = vrot.lane.b32.xlu0 %v220, 123
        %v258 = vpop.permute.xlu0 %257
        %v261 = vadd.f32 %v253, %v256
        %v262 = vadd.f32 %v254, %v258
        %263 = vrot.lane.b32.xlu0 %v219, 122
        %v264 = vpop.permute.xlu0 %263
        %265 = vrot.lane.b32.xlu0 %v220, 122
        %v266 = vpop.permute.xlu0 %265
        %v269 = vadd.f32 %v261, %v264
        %v270 = vadd.f32 %v262, %v266
        %v271 = vrot.slane %v269, 1
        %v272 = vrot.slane %v270, 1
        %v273 = vlaneseq
        %v274 = vshrl.u32 %v273, 7
        %vm275 = vcmp.lt.s32.totalorder %v274, 7
        %v276 = vsel %vm275, %v271, %v272
        %v277 = vsel %vm275, %v272, %v271
        %v278 = vadd.f32 %v269, %v276
        %v279 = vadd.f32 %v270, %v277
        %v280 = vrot.slane %v269, 2
        %v281 = vrot.slane %v270, 2
        %vm282 = vcmp.lt.s32.totalorder %v274, 6
        %v283 = vsel %vm282, %v280, %v281
        %v284 = vsel %vm282, %v281, %v280
        %v285 = vadd.f32 %v278, %v283
        %v286 = vadd.f32 %v279, %v284
        %v287 = vrot.slane %v269, 3
        %v288 = vrot.slane %v270, 3
        %vm289 = vcmp.lt.s32.totalorder %v274, 5
        %v290 = vsel %vm289, %v287, %v288
        %v291 = vsel %vm289, %v288, %v287
        %v292 = vadd.f32 %v285, %v290
        %v293 = vadd.f32 %v286, %v291
        %v294 = vrot.slane %v269, 4
        %v295 = vrot.slane %v270, 4
        %vm296 = vcmp.lt.s32.totalorder %v274, 4
        %v297 = vsel %vm296, %v294, %v295
        %v298 = vsel %vm296, %v295, %v294
        %v299 = vadd.f32 %v292, %v297
        %v300 = vadd.f32 %v293, %v298
        %v301 = vrot.slane %v269, 5
        %v302 = vrot.slane %v270, 5
        %vm303 = vcmp.lt.s32.totalorder %v274, 3
        %v304 = vsel %vm303, %v301, %v302
        %v305 = vsel %vm303, %v302, %v301
        %v306 = vadd.f32 %v299, %v304
        %v307 = vadd.f32 %v300, %v305
        %v308 = vrot.slane %v269, 6
        %v309 = vrot.slane %v270, 6
        %vm310 = vcmp.lt.s32.totalorder %v274, 2
        %v311 = vsel %vm310, %v308, %v309
        %v312 = vsel %vm310, %v309, %v308
        %v313 = vadd.f32 %v306, %v311
        %v314 = vadd.f32 %v307, %v312
        %v315 = vmul.f32 %v313, 0.020408163
        %v316 = vmul.f32 %v314, 0.020408163
        %317 = vrot.lane.b32.xlu0 %v206, 16
        %v318 = vpop.permute.xlu0 %317
        %v319 = vsel %vm208, %v318, %v206
        %320 = vrot.lane.b32.xlu0 %v207, 16
        %v321 = vpop.permute.xlu0 %320
        %v322 = vsel %vm208, %v321, %v207
        %323 = vrot.lane.b32.xlu0 %v319, 16
        %v324 = vpop.permute.xlu0 %323
        %325 = vrot.lane.b32.xlu0 %v322, 16
        %v326 = vpop.permute.xlu0 %325
        %v327 = vsel %vm208, %v324, %v206
        %v328 = vsel %vm208, %v326, %v207
        %331 = vrot.lane.b32.xlu0 %v327, 127
        %v332 = vpop.permute.xlu0 %331
        %333 = vrot.lane.b32.xlu0 %v328, 127
        %v334 = vpop.permute.xlu0 %333
        %v337 = vadd.f32 %v206, %v332
        %v338 = vadd.f32 %v207, %v334
        %339 = vrot.lane.b32.xlu0 %v327, 126
        %v340 = vpop.permute.xlu0 %339
        %341 = vrot.lane.b32.xlu0 %v328, 126
        %v342 = vpop.permute.xlu0 %341
        %v345 = vadd.f32 %v337, %v340
        %v346 = vadd.f32 %v338, %v342
        %347 = vrot.lane.b32.xlu0 %v327, 125
        %v348 = vpop.permute.xlu0 %347
        %349 = vrot.lane.b32.xlu0 %v328, 125
        %v350 = vpop.permute.xlu0 %349
        %v353 = vadd.f32 %v345, %v348
        %v354 = vadd.f32 %v346, %v350
        %355 = vrot.lane.b32.xlu0 %v327, 124
        %v356 = vpop.permute.xlu0 %355
        %357 = vrot.lane.b32.xlu0 %v328, 124
        %v358 = vpop.permute.xlu0 %357
        %v361 = vadd.f32 %v353, %v356
        %v362 = vadd.f32 %v354, %v358
        %363 = vrot.lane.b32.xlu0 %v327, 123
        %v364 = vpop.permute.xlu0 %363
        %365 = vrot.lane.b32.xlu0 %v328, 123
        %v366 = vpop.permute.xlu0 %365
        %v369 = vadd.f32 %v361, %v364
        %v370 = vadd.f32 %v362, %v366
        %371 = vrot.lane.b32.xlu0 %v327, 122
        %v372 = vpop.permute.xlu0 %371
        %373 = vrot.lane.b32.xlu0 %v328, 122
        %v374 = vpop.permute.xlu0 %373
        %v377 = vadd.f32 %v369, %v372
        %v378 = vadd.f32 %v370, %v374
        %v379 = vrot.slane %v377, 1
        %v380 = vrot.slane %v378, 1
        %v381 = vsel %vm275, %v379, %v380
        %v382 = vsel %vm275, %v380, %v379
        %v383 = vadd.f32 %v377, %v381
        %v384 = vadd.f32 %v378, %v382
        %v385 = vrot.slane %v377, 2
        %v386 = vrot.slane %v378, 2
        %v387 = vsel %vm282, %v385, %v386
        %v388 = vsel %vm282, %v386, %v385
        %v389 = vadd.f32 %v383, %v387
        %v390 = vadd.f32 %v384, %v388
        %v391 = vrot.slane %v377, 3
        %v392 = vrot.slane %v378, 3
        %v393 = vsel %vm289, %v391, %v392
        %v394 = vsel %vm289, %v392, %v391
        %v395 = vadd.f32 %v389, %v393
        %v396 = vadd.f32 %v390, %v394
        %v397 = vrot.slane %v377, 4
        %v398 = vrot.slane %v378, 4
        %v399 = vsel %vm296, %v397, %v398
        %v400 = vsel %vm296, %v398, %v397
        %v401 = vadd.f32 %v395, %v399
        %v402 = vadd.f32 %v396, %v400
        %v403 = vrot.slane %v377, 5
        %v404 = vrot.slane %v378, 5
        %v405 = vsel %vm303, %v403, %v404
        %v406 = vsel %vm303, %v404, %v403
        %v407 = vadd.f32 %v401, %v405
        %v408 = vadd.f32 %v402, %v406
        %v409 = vrot.slane %v377, 6
        %v410 = vrot.slane %v378, 6
        %v411 = vsel %vm310, %v409, %v410
        %v412 = vsel %vm310, %v410, %v409
        %v413 = vadd.f32 %v407, %v411
        %v414 = vadd.f32 %v408, %v412
        %v415 = vmul.f32 %v413, 0.020408163
        %v416 = vmul.f32 %v414, 0.020408163
        %v417 = vmul.f32 %v204, %v204
        %v418 = vmul.f32 %v205, %v205
        %419 = vrot.lane.b32.xlu0 %v417, 16
        %v420 = vpop.permute.xlu0 %419
        %v421 = vsel %vm208, %v420, %v417
        %422 = vrot.lane.b32.xlu0 %v418, 16
        %v423 = vpop.permute.xlu0 %422
        %v424 = vsel %vm208, %v423, %v418
        %425 = vrot.lane.b32.xlu0 %v421, 16
        %v426 = vpop.permute.xlu0 %425
        %427 = vrot.lane.b32.xlu0 %v424, 16
        %v428 = vpop.permute.xlu0 %427
        %v429 = vsel %vm208, %v426, %v417
        %v430 = vsel %vm208, %v428, %v418
        %433 = vrot.lane.b32.xlu0 %v429, 127
        %v434 = vpop.permute.xlu0 %433
        %435 = vrot.lane.b32.xlu0 %v430, 127
        %v436 = vpop.permute.xlu0 %435
        %v439 = vadd.f32 %v417, %v434
        %v440 = vadd.f32 %v418, %v436
        %441 = vrot.lane.b32.xlu0 %v429, 126
        %v442 = vpop.permute.xlu0 %441
        %443 = vrot.lane.b32.xlu0 %v430, 126
        %v444 = vpop.permute.xlu0 %443
        %v447 = vadd.f32 %v439, %v442
        %v448 = vadd.f32 %v440, %v444
        %449 = vrot.lane.b32.xlu0 %v429, 125
        %v450 = vpop.permute.xlu0 %449
        %451 = vrot.lane.b32.xlu0 %v430, 125
        %v452 = vpop.permute.xlu0 %451
        %v455 = vadd.f32 %v447, %v450
        %v456 = vadd.f32 %v448, %v452
        %457 = vrot.lane.b32.xlu0 %v429, 124
        %v458 = vpop.permute.xlu0 %457
        %459 = vrot.lane.b32.xlu0 %v430, 124
        %v460 = vpop.permute.xlu0 %459
        %v463 = vadd.f32 %v455, %v458
        %v464 = vadd.f32 %v456, %v460
        %465 = vrot.lane.b32.xlu0 %v429, 123
        %v466 = vpop.permute.xlu0 %465
        %467 = vrot.lane.b32.xlu0 %v430, 123
        %v468 = vpop.permute.xlu0 %467
        %v471 = vadd.f32 %v463, %v466
        %v472 = vadd.f32 %v464, %v468
        %473 = vrot.lane.b32.xlu0 %v429, 122
        %v474 = vpop.permute.xlu0 %473
        %475 = vrot.lane.b32.xlu0 %v430, 122
        %v476 = vpop.permute.xlu0 %475
        %v479 = vadd.f32 %v471, %v474
        %v480 = vadd.f32 %v472, %v476
        %v481 = vrot.slane %v479, 1
        %v482 = vrot.slane %v480, 1
        %v483 = vsel %vm275, %v481, %v482
        %v484 = vsel %vm275, %v482, %v481
        %v485 = vadd.f32 %v479, %v483
        %v486 = vadd.f32 %v480, %v484
        %v487 = vrot.slane %v479, 2
        %v488 = vrot.slane %v480, 2
        %v489 = vsel %vm282, %v487, %v488
        %v490 = vsel %vm282, %v488, %v487
        %v491 = vadd.f32 %v485, %v489
        %v492 = vadd.f32 %v486, %v490
        %v493 = vrot.slane %v479, 3
        %v494 = vrot.slane %v480, 3
        %v495 = vsel %vm289, %v493, %v494
        %v496 = vsel %vm289, %v494, %v493
        %v497 = vadd.f32 %v491, %v495
        %v498 = vadd.f32 %v492, %v496
        %v499 = vrot.slane %v479, 4
        %v500 = vrot.slane %v480, 4
        %v501 = vsel %vm296, %v499, %v500
        %v502 = vsel %vm296, %v500, %v499
        %v503 = vadd.f32 %v497, %v501
        %v504 = vadd.f32 %v498, %v502
        %v505 = vrot.slane %v479, 5
        %v506 = vrot.slane %v480, 5
        %v507 = vsel %vm303, %v505, %v506
        %v508 = vsel %vm303, %v506, %v505
        %v509 = vadd.f32 %v503, %v507
        %v510 = vadd.f32 %v504, %v508
        %v511 = vrot.slane %v479, 6
        %v512 = vrot.slane %v480, 6
        %v513 = vsel %vm310, %v511, %v512
        %v514 = vsel %vm310, %v512, %v511
        %v515 = vadd.f32 %v509, %v513
        %v516 = vadd.f32 %v510, %v514
        %v517 = vmul.f32 %v515, 0.020408163
        %v518 = vmul.f32 %v516, 0.020408163
        %v519 = vmul.f32 %v206, %v206
        %v520 = vmul.f32 %v207, %v207
        %521 = vrot.lane.b32.xlu0 %v519, 16
        %v522 = vpop.permute.xlu0 %521
        %v523 = vsel %vm208, %v522, %v519
        %524 = vrot.lane.b32.xlu0 %v520, 16
        %v525 = vpop.permute.xlu0 %524
        %v526 = vsel %vm208, %v525, %v520
        %527 = vrot.lane.b32.xlu0 %v523, 16
        %v528 = vpop.permute.xlu0 %527
        %529 = vrot.lane.b32.xlu0 %v526, 16
        %v530 = vpop.permute.xlu0 %529
        %v531 = vsel %vm208, %v528, %v519
        %v532 = vsel %vm208, %v530, %v520
        %535 = vrot.lane.b32.xlu0 %v531, 127
        %v536 = vpop.permute.xlu0 %535
        %537 = vrot.lane.b32.xlu0 %v532, 127
        %v538 = vpop.permute.xlu0 %537
        %v541 = vadd.f32 %v519, %v536
        %v542 = vadd.f32 %v520, %v538
        %543 = vrot.lane.b32.xlu0 %v531, 126
        %v544 = vpop.permute.xlu0 %543
        %545 = vrot.lane.b32.xlu0 %v532, 126
        %v546 = vpop.permute.xlu0 %545
        %v549 = vadd.f32 %v541, %v544
        %v550 = vadd.f32 %v542, %v546
        %551 = vrot.lane.b32.xlu0 %v531, 125
        %v552 = vpop.permute.xlu0 %551
        %553 = vrot.lane.b32.xlu0 %v532, 125
        %v554 = vpop.permute.xlu0 %553
        %v557 = vadd.f32 %v549, %v552
        %v558 = vadd.f32 %v550, %v554
        %559 = vrot.lane.b32.xlu0 %v531, 124
        %v560 = vpop.permute.xlu0 %559
        %561 = vrot.lane.b32.xlu0 %v532, 124
        %v562 = vpop.permute.xlu0 %561
        %v565 = vadd.f32 %v557, %v560
        %v566 = vadd.f32 %v558, %v562
        %567 = vrot.lane.b32.xlu0 %v531, 123
        %v568 = vpop.permute.xlu0 %567
        %569 = vrot.lane.b32.xlu0 %v532, 123
        %v570 = vpop.permute.xlu0 %569
        %v573 = vadd.f32 %v565, %v568
        %v574 = vadd.f32 %v566, %v570
        %575 = vrot.lane.b32.xlu0 %v531, 122
        %v576 = vpop.permute.xlu0 %575
        %577 = vrot.lane.b32.xlu0 %v532, 122
        %v578 = vpop.permute.xlu0 %577
        %v581 = vadd.f32 %v573, %v576
        %v582 = vadd.f32 %v574, %v578
        %v583 = vrot.slane %v581, 1
        %v584 = vrot.slane %v582, 1
        %v585 = vsel %vm275, %v583, %v584
        %v586 = vsel %vm275, %v584, %v583
        %v587 = vadd.f32 %v581, %v585
        %v588 = vadd.f32 %v582, %v586
        %v589 = vrot.slane %v581, 2
        %v590 = vrot.slane %v582, 2
        %v591 = vsel %vm282, %v589, %v590
        %v592 = vsel %vm282, %v590, %v589
        %v593 = vadd.f32 %v587, %v591
        %v594 = vadd.f32 %v588, %v592
        %v595 = vrot.slane %v581, 3
        %v596 = vrot.slane %v582, 3
        %v597 = vsel %vm289, %v595, %v596
        %v598 = vsel %vm289, %v596, %v595
        %v599 = vadd.f32 %v593, %v597
        %v600 = vadd.f32 %v594, %v598
        %v601 = vrot.slane %v581, 4
        %v602 = vrot.slane %v582, 4
        %v603 = vsel %vm296, %v601, %v602
        %v604 = vsel %vm296, %v602, %v601
        %v605 = vadd.f32 %v599, %v603
        %v606 = vadd.f32 %v600, %v604
        %v607 = vrot.slane %v581, 5
        %v608 = vrot.slane %v582, 5
        %v609 = vsel %vm303, %v607, %v608
        %v610 = vsel %vm303, %v608, %v607
        %v611 = vadd.f32 %v605, %v609
        %v612 = vadd.f32 %v606, %v610
        %v613 = vrot.slane %v581, 6
        %v614 = vrot.slane %v582, 6
        %v615 = vsel %vm310, %v613, %v614
        %v616 = vsel %vm310, %v614, %v613
        %v617 = vadd.f32 %v611, %v615
        %v618 = vadd.f32 %v612, %v616
        %v619 = vmul.f32 %v617, 0.020408163
        %v620 = vmul.f32 %v618, 0.020408163
        %v621 = vmul.f32 %v204, %v206
        %v622 = vmul.f32 %v205, %v207
        %623 = vrot.lane.b32.xlu0 %v621, 16
        %v624 = vpop.permute.xlu0 %623
        %v625 = vsel %vm208, %v624, %v621
        %626 = vrot.lane.b32.xlu0 %v622, 16
        %v627 = vpop.permute.xlu0 %626
        %v628 = vsel %vm208, %v627, %v622
        %629 = vrot.lane.b32.xlu0 %v625, 16
        %v630 = vpop.permute.xlu0 %629
        %631 = vrot.lane.b32.xlu0 %v628, 16
        %v632 = vpop.permute.xlu0 %631
        %v633 = vsel %vm208, %v630, %v621
        %v634 = vsel %vm208, %v632, %v622
        %637 = vrot.lane.b32.xlu0 %v633, 127
        %v638 = vpop.permute.xlu0 %637
        %639 = vrot.lane.b32.xlu0 %v634, 127
        %v640 = vpop.permute.xlu0 %639
        %v643 = vadd.f32 %v621, %v638
        %v644 = vadd.f32 %v622, %v640
        %645 = vrot.lane.b32.xlu0 %v633, 126
        %v646 = vpop.permute.xlu0 %645
        %647 = vrot.lane.b32.xlu0 %v634, 126
        %v648 = vpop.permute.xlu0 %647
        %v651 = vadd.f32 %v643, %v646
        %v652 = vadd.f32 %v644, %v648
        %653 = vrot.lane.b32.xlu0 %v633, 125
        %v654 = vpop.permute.xlu0 %653
        %655 = vrot.lane.b32.xlu0 %v634, 125
        %v656 = vpop.permute.xlu0 %655
        %v659 = vadd.f32 %v651, %v654
        %v660 = vadd.f32 %v652, %v656
        %661 = vrot.lane.b32.xlu0 %v633, 124
        %v662 = vpop.permute.xlu0 %661
        %663 = vrot.lane.b32.xlu0 %v634, 124
        %v664 = vpop.permute.xlu0 %663
        %v667 = vadd.f32 %v659, %v662
        %v668 = vadd.f32 %v660, %v664
        %669 = vrot.lane.b32.xlu0 %v633, 123
        %v670 = vpop.permute.xlu0 %669
        %671 = vrot.lane.b32.xlu0 %v634, 123
        %v672 = vpop.permute.xlu0 %671
        %v675 = vadd.f32 %v667, %v670
        %v676 = vadd.f32 %v668, %v672
        %677 = vrot.lane.b32.xlu0 %v633, 122
        %v678 = vpop.permute.xlu0 %677
        %679 = vrot.lane.b32.xlu0 %v634, 122
        %v680 = vpop.permute.xlu0 %679
        %v683 = vadd.f32 %v675, %v678
        %v684 = vadd.f32 %v676, %v680
        %v685 = vrot.slane %v683, 1
        %v686 = vrot.slane %v684, 1
        %v687 = vsel %vm275, %v685, %v686
        %v688 = vsel %vm275, %v686, %v685
        %v689 = vadd.f32 %v683, %v687
        %v690 = vadd.f32 %v684, %v688
        %v691 = vrot.slane %v683, 2
        %v692 = vrot.slane %v684, 2
        %v693 = vsel %vm282, %v691, %v692
        %v694 = vsel %vm282, %v692, %v691
        %v695 = vadd.f32 %v689, %v693
        %v696 = vadd.f32 %v690, %v694
        %v697 = vrot.slane %v683, 3
        %v698 = vrot.slane %v684, 3
        %v699 = vsel %vm289, %v697, %v698
        %v700 = vsel %vm289, %v698, %v697
        %v701 = vadd.f32 %v695, %v699
        %v702 = vadd.f32 %v696, %v700
        %v703 = vrot.slane %v683, 4
        %v704 = vrot.slane %v684, 4
        %v705 = vsel %vm296, %v703, %v704
        %v706 = vsel %vm296, %v704, %v703
        %v707 = vadd.f32 %v701, %v705
        %v708 = vadd.f32 %v702, %v706
        %v709 = vrot.slane %v683, 5
        %v710 = vrot.slane %v684, 5
        %v711 = vsel %vm303, %v709, %v710
        %v712 = vsel %vm303, %v710, %v709
        %v713 = vadd.f32 %v707, %v711
        %v714 = vadd.f32 %v708, %v712
        %v715 = vrot.slane %v683, 6
        %v716 = vrot.slane %v684, 6
        %v717 = vsel %vm310, %v715, %v716
        %v718 = vsel %vm310, %v716, %v715
        %v719 = vadd.f32 %v713, %v717
        %v720 = vadd.f32 %v714, %v718
        %v721 = vmul.f32 %v719, 0.020408163
        %v722 = vmul.f32 %v720, 0.020408163
        %v723 = vmul.f32 %v315, %v315
        %v724 = vmul.f32 %v316, %v316
        %v725 = vsub.f32 %v517, %v723
        %v726 = vsub.f32 %v518, %v724
        %v727 = vmul.f32 %v725, 1.0208334
        %v728 = vmul.f32 %v726, 1.0208334
        %v729 = vmul.f32 %v415, %v415
        %v730 = vmul.f32 %v416, %v416
        %v731 = vsub.f32 %v619, %v729
        %v732 = vsub.f32 %v620, %v730
        %v733 = vmul.f32 %v731, 1.0208334
        %v734 = vmul.f32 %v732, 1.0208334
        %v735 = vmul.f32 %v315, %v415
        %v736 = vmul.f32 %v316, %v416
        %v737 = vsub.f32 %v721, %v735
        %v738 = vsub.f32 %v722, %v736
        %v739 = vmul.f32 %v737, 1.0208334
        %v740 = vmul.f32 %v738, 1.0208334
        %v741 = vmul.f32 %v315, 2.0
        %v742 = vmul.f32 %v316, 2.0
        %v743 = vmul.f32 %v741, %v415
        %v744 = vmul.f32 %v742, %v416
        %v745 = vadd.f32 %v743, 0.0001
        %v746 = vadd.f32 %v744, 0.0001
        %v747 = vmul.f32 %v739, 2.0
        %v748 = vmul.f32 %v740, 2.0
        %v749 = vadd.f32 %v747, 0.0009
        %v750 = vadd.f32 %v748, 0.0009
        %v751 = vadd.f32 %v723, %v729
        %v752 = vadd.f32 %v724, %v730
        %v753 = vadd.f32 %v751, 0.0001
        %v754 = vadd.f32 %v752, 0.0001
        %v755 = vadd.f32 %v727, %v733
        %v756 = vadd.f32 %v728, %v734
        %v757 = vadd.f32 %v755, 0.0009
        %v758 = vadd.f32 %v756, 0.0009
        %v759 = vmul.f32 %v745, %v749
        %v760 = vmul.f32 %v746, %v750
        %v761 = vmul.f32 %v753, %v757
        %v762 = vmul.f32 %v754, %v758
        %v763 = vrcp.pop %v761
        %v764 = vmul.f32 %v759, %v763
        %v765 = vrcp.pop %v762
        %v766 = vmul.f32 %v760, %v765
        %vm767 = vcmask 80896
        %768 = vst.msk [vmem:[%s203] sm:$0xff] %vm767, %v764
        %vm769 = vcmask 74752
        %770 = vst.msk [vmem:[%s203 + $0x8] sm:$0x3] %vm769, %v766
        %p771 = scmp.lt.s32.totalorder %s19, 1
        %s772 = scalar_select %p771, %s19, 1
        %s773 = smul.addr %s772, 2
        %s774 = smul.addr %s773, 8
        %s775 = scalar_lea.vmem %s2, %s774
        // Predicated region
        $region37: #{tpu_custom_call.1} parent=27 // pred_check
          %p776 = pneg %p89
        $region38: #{tpu_custom_call.1} parent=27 // pred_check_branch
          %778 = sbr.rel (%p776) target = $region40
        $region39: #{tpu_custom_call.1} parent=27 // pred_region
          _
        $region40: #{tpu_custom_call.1} parent=27 // pred_fallthru
          _
      $region28: #{tpu_custom_call.1} parent=5 // pred_fallthru
        _
      %p779 = scmp.le.s32.totalorder 2, %s14
      // Predicated region
      $region41: #{tpu_custom_call.1} parent=5 // pred_check
        %p780 = pneg %p779
      $region42: #{tpu_custom_call.1} parent=5 // pred_check_branch
        %782 = sbr.rel (%p780) target = $region44
      $region43: #{tpu_custom_call.1} parent=5 // pred_region
        %s783 = ssub.s32 %s14, 2
        // Predicated region
        $region45: #{tpu_custom_call.1} parent=43 // pred_check
          %p784 = pneg %p95
        $region46: #{tpu_custom_call.1} parent=43 // pred_check_branch
          %786 = sbr.rel (%p784) target = $region48
        $region47: #{tpu_custom_call.1} parent=43 // pred_region
          %p787 = scmp.lt.s32.totalorder %s20, 1
          %s788 = scalar_select %p787, %s20, 1
          %s789 = smul.addr %s788, 2
          %s790 = smul.addr %s789, 8
          %s791 = scalar_lea.vmem %s2, %s790
        $region48: #{tpu_custom_call.1} parent=43 // pred_fallthru
          _
      $region44: #{tpu_custom_call.1} parent=5 // pred_fallthru
        _
    $region6: #{tpu_custom_call.1} parent=1 // loop_footer
      %s18 = sadd.s32 1, %s14
    $region7: #{tpu_custom_call.1} parent=1 // loop_footer_branch
      %13 = sbr.rel target = $region3
    $region8: #{tpu_custom_call.1} parent=1 // loop_exit
      _
    %792 = vsyncpa [#allocation3], 1
    %s793 = scalar_lea.sflag [#allocation3], 1
    %794 = vsyncpa %s793, 1
    %795 = vsyncpa [#allocation5], 1
    %s796 = scalar_lea.sflag [#allocation5], 1
    %797 = vsyncpa %s796, 1

</llo_original>
